<compile_context>
chip_gen: v5e
topology: v5e:2x2
jax: 0.10.0
libtpu: 0.0.40
codegen_flags: <defaults>
</compile_context>

<pallas_src>
import functools

import jax
import jax.numpy as jnp
from jax.experimental import pallas as pl
from jax.experimental.pallas import tpu as pltpu


_LANES = 128


def _round_up(x, m):
    return ((x + m - 1) // m) * m


def _mlp_kernel(x_ref, p_ref, o_ref, *, hidden_size, output_size,
                w2_row, w3_row):
    H, O = hidden_size, output_size
    x = x_ref[...]                               # (N, 1)

    # Static slices into the packed parameter slab (cheap in-VMEM views).
    w1 = p_ref[0:1, :H]                          # (1, H)  == W1.T
    b1 = p_ref[1:2, :H]                          # (1, H)
    b2 = p_ref[2:3, :H]                          # (1, H)
    b3 = p_ref[3:4, :O]                          # (1, O)
    w2 = p_ref[w2_row:w2_row + H, :H]            # (H, H)  == W2.T
    w3 = p_ref[w3_row:w3_row + H, :O]            # (H, O)  == W3.T

    # Layer 1 (in_features == 1): broadcast outer product on the VPU.
    h1 = jnp.maximum(x * w1 + b1, 0.0)           # (N, H)

    # Layer 2: MXU matmul + ReLU.
    h2 = jnp.dot(h1, w2, preferred_element_type=jnp.float32) + b2
    h2 = jnp.maximum(h2, 0.0)                    # (N, H)

    # Layer 3: MXU matmul.
    z = jnp.dot(h2, w3, preferred_element_type=jnp.float32) + b3   # (N, O)

    # softmax(logsigmoid(z), dim=1) == sigmoid(z) / row_sum(sigmoid(z)).
    s = pl.reciprocal(1.0 + jnp.exp(-z), approx=False)             # sigmoid(z)
    denom = jnp.sum(s, axis=1, keepdims=True)
    o_ref[...] = (s * pl.reciprocal(denom, approx=False)).astype(o_ref.dtype)


def pack_params(params, hidden_size=20, output_size=2):
    """Pack PyTorch-layout (W, b) params into one lane-dense (rows, 128) slab.

    Done once at init time: hoists all weight transposes / bias reshapes out
    of the per-forward-call path and collapses 6 tiny DMAs into 1.
    """
    w1, b1, w2, b2, w3, b3 = params
    H, O = hidden_size, output_size
    assert w1.shape == (H, 1) and w2.shape == (H, H) and w3.shape == (O, H)

    w2_row = 8                                   # 8-row aligned sections
    w3_row = w2_row + _round_up(H, 8)
    total_rows = w3_row + _round_up(H, 8)

    slab = jnp.zeros((total_rows, _LANES), jnp.float32)
    slab = slab.at[0, :H].set(w1.reshape(-1))    # W1.T as a row vector
    slab = slab.at[1, :H].set(b1)
    slab = slab.at[2, :H].set(b2)
    slab = slab.at[3, :O].set(b3)
    slab = slab.at[w2_row:w2_row + H, :H].set(w2.T)
    slab = slab.at[w3_row:w3_row + H, :O].set(w3.T)
    return slab, (w2_row, w3_row)


@functools.partial(jax.jit, static_argnames=("hidden_size", "output_size",
                                             "w2_row", "w3_row"))
def meta_optimizer_mlp(inp, param_slab, *, hidden_size=20, output_size=2,
                       w2_row=8, w3_row=32):
    """inp: [1, N] float32 (PyTorch convention). Returns [N, output_size]."""
    x = inp.T                                    # torch.t(inp): (N, 1)
    n = x.shape[0]

    kernel = functools.partial(
        _mlp_kernel, hidden_size=hidden_size, output_size=output_size,
        w2_row=w2_row, w3_row=w3_row)

    vmem = pl.BlockSpec(memory_space=pltpu.MemorySpace.VMEM)
    return pl.pallas_call(
        kernel,
        out_shape=jax.ShapeDtypeStruct((n, output_size), jnp.float32),
        in_specs=[vmem, vmem],
        out_specs=vmem,
    )(x, param_slab)


def init_params(key, hidden_size=20, output_size=2):
    """PyTorch nn.Linear default init: U[-1/sqrt(fan_in), 1/sqrt(fan_in)]."""
    ks = jax.random.split(key, 6)

    def linear(kw, kb, fan_in, fan_out):
        bound = 1.0 / jnp.sqrt(jnp.float32(fan_in))
        w = jax.random.uniform(kw, (fan_out, fan_in), jnp.float32, -bound, bound)
        b = jax.random.uniform(kb, (fan_out,), jnp.float32, -bound, bound)
        return w, b

    w1, b1 = linear(ks[0], ks[1], 1, hidden_size)
    w2, b2 = linear(ks[2], ks[3], hidden_size, hidden_size)
    w3, b3 = linear(ks[4], ks[5], hidden_size, output_size)
    return (w1, b1, w2, b2, w3, b3)


if __name__ == "__main__":
    key = jax.random.PRNGKey(0)
    k_inp, k_par = jax.random.split(key)

    hidden_size, output_size, seq = 20, 2, 8
    # torch.t(inp) must yield [N, 1] for Linear(1, H)  =>  inp is [1, N]
    inp = jax.random.normal(k_inp, (1, seq), dtype=jnp.float32)
    params = init_params(k_par, hidden_size, output_size)
    slab, (w2_row, w3_row) = pack_params(params, hidden_size, output_size)

    out = meta_optimizer_mlp(inp, slab, hidden_size=hidden_size,
                             output_size=output_size,
                             w2_row=w2_row, w3_row=w3_row)
    jax.block_until_ready(out)

    # Pure-JAX reference (original, un-fused formulation) for correctness.
    w1, b1, w2, b2, w3, b3 = params
    x = inp.T
    h1 = jnp.maximum(x @ w1.T + b1, 0.0)
    h2 = jnp.maximum(h1 @ w2.T + b2, 0.0)
    z = h2 @ w3.T + b3
    ls = jnp.minimum(z, 0.0) - jnp.log1p(jnp.exp(-jnp.abs(z)))
    ref = jax.nn.softmax(ls, axis=1)

    assert out.shape == (seq, output_size)
    assert bool(jnp.all(jnp.abs(jnp.sum(out, axis=1) - 1.0) < 1e-5))
    assert bool(jnp.all(jnp.abs(out - ref) < 1e-5))
    print("KERNEL_OK")
</pallas_src>

<mosaic_0001>
module attributes {stable_mosaic.version = 11 : i64} {
  func.func @_mlp_kernel(%arg0: memref<8x1xf32, #tpu.memory_space<vmem>>, %arg1: memref<56x128xf32, #tpu.memory_space<vmem>>, %arg2: memref<8x2xf32, #tpu.memory_space<vmem>>) attributes {dimension_semantics = [], scalar_prefetch = 0 : i64, scratch_operands = 0 : i64, tpu.core_type = #tpu.core_type<tc>} {
    %c0 = arith.constant 0 : index
    %c0_0 = arith.constant 0 : index
    %0 = vector.load %arg0[%c0, %c0_0] : memref<8x1xf32, #tpu.memory_space<vmem>>, vector<8x1xf32>
    %c0_1 = arith.constant 0 : index
    %c0_2 = arith.constant 0 : index
    %1 = vector.load %arg1[%c0_1, %c0_2] : memref<56x128xf32, #tpu.memory_space<vmem>>, vector<1x20xf32>
    %c1 = arith.constant 1 : index
    %c0_3 = arith.constant 0 : index
    %2 = vector.load %arg1[%c1, %c0_3] : memref<56x128xf32, #tpu.memory_space<vmem>>, vector<1x20xf32>
    %c2 = arith.constant 2 : index
    %c0_4 = arith.constant 0 : index
    %3 = vector.load %arg1[%c2, %c0_4] : memref<56x128xf32, #tpu.memory_space<vmem>>, vector<1x20xf32>
    %c3 = arith.constant 3 : index
    %c0_5 = arith.constant 0 : index
    %4 = vector.load %arg1[%c3, %c0_5] : memref<56x128xf32, #tpu.memory_space<vmem>>, vector<1x2xf32>
    %c8 = arith.constant 8 : index
    %c0_6 = arith.constant 0 : index
    %5 = vector.load %arg1[%c8, %c0_6] : memref<56x128xf32, #tpu.memory_space<vmem>>, vector<20x20xf32>
    %c32 = arith.constant 32 : index
    %c0_7 = arith.constant 0 : index
    %6 = vector.load %arg1[%c32, %c0_7] : memref<56x128xf32, #tpu.memory_space<vmem>>, vector<20x2xf32>
    %7 = vector.broadcast %0 : vector<8x1xf32> to vector<8x20xf32>
    %8 = vector.broadcast %1 : vector<1x20xf32> to vector<8x20xf32>
    %9 = arith.mulf %7, %8 : vector<8x20xf32>
    %10 = vector.broadcast %2 : vector<1x20xf32> to vector<8x20xf32>
    %11 = arith.addf %9, %10 : vector<8x20xf32>
    %cst = arith.constant 0.000000e+00 : f32
    %12 = vector.broadcast %cst : f32 to vector<8x20xf32>
    %13 = arith.maximumf %11, %12 : vector<8x20xf32>
    %cst_8 = arith.constant dense<0.000000e+00> : vector<8x20xf32>
    %14 = tpu.matmul %13, %5, %cst_8 {dimension_numbers = #tpu.dot_dimension_numbers<[1], [0], [0], [1], [0, 0, 1, 1], [], []>} : vector<8x20xf32>, vector<20x20xf32>, vector<8x20xf32> -> vector<8x20xf32>
    %15 = vector.broadcast %3 : vector<1x20xf32> to vector<8x20xf32>
    %16 = arith.addf %14, %15 : vector<8x20xf32>
    %cst_9 = arith.constant 0.000000e+00 : f32
    %17 = vector.broadcast %cst_9 : f32 to vector<8x20xf32>
    %18 = arith.maximumf %16, %17 : vector<8x20xf32>
    %cst_10 = arith.constant dense<0.000000e+00> : vector<8x2xf32>
    %19 = tpu.matmul %18, %6, %cst_10 {dimension_numbers = #tpu.dot_dimension_numbers<[1], [0], [0], [1], [0, 0, 1, 1], [], []>} : vector<8x20xf32>, vector<20x2xf32>, vector<8x2xf32> -> vector<8x2xf32>
    %20 = vector.broadcast %4 : vector<1x2xf32> to vector<8x2xf32>
    %21 = arith.addf %19, %20 : vector<8x2xf32>
    %cst_11 = arith.constant 0.000000e+00 : f32
    %22 = vector.broadcast %cst_11 : f32 to vector<8x2xf32>
    %23 = arith.subf %22, %21 : vector<8x2xf32>
    %24 = math.exp %23 : vector<8x2xf32>
    %cst_12 = arith.constant 1.000000e+00 : f32
    %25 = vector.broadcast %cst_12 : f32 to vector<8x2xf32>
    %26 = arith.addf %25, %24 : vector<8x2xf32>
    %27 = tpu.reciprocal %26 : vector<8x2xf32> -> vector<8x2xf32>
    %cst_13 = arith.constant dense<0.000000e+00> : vector<8xf32>
    %28 = vector.multi_reduction <add>, %27, %cst_13 [1] : vector<8x2xf32> to vector<8xf32>
    %29 = vector.shape_cast %28 : vector<8xf32> to vector<8x1xf32>
    %30 = tpu.reciprocal %29 : vector<8x1xf32> -> vector<8x1xf32>
    %31 = vector.broadcast %30 : vector<8x1xf32> to vector<8x2xf32>
    %32 = arith.mulf %27, %31 : vector<8x2xf32>
    %c0_14 = arith.constant 0 : index
    %c0_15 = arith.constant 0 : index
    %33 = vector.load %arg2[%c0_14, %c0_15] : memref<8x2xf32, #tpu.memory_space<vmem>>, vector<8x2xf32>
    tpu.vector_store %arg2[%c0_14, %c0_15], %32 {strides = array<i32>} : memref<8x2xf32, #tpu.memory_space<vmem>>, vector<8x2xf32>,
    return
  }
}

</mosaic_0001>

<llo_original>
// kernel: meta_optimizer_mlp.1
$region0: #{meta_optimizer_mlp.1}
  #allocation0 [shape = 'u32[]', space=smem, size = 0x4, offset = 0x4, fixed_abs, tag = 'smem constant byte address 0x4 - core index']
  #allocation1 [shape = 'u32[72,128]{1,0:T(1,128)}', space=vmem, size = 0x9000, scoped, tag = 'internal scratch']
  %s0 = inlined_call_operand.vmem [shape: f32[8,1], index: 0, kind: input, shape index: {}]
  %s1 = inlined_call_operand.hbm [shape: f32[56,128], index: 1, kind: input, shape index: {}]
  %s2 = inlined_call_operand.vmem [shape: f32[8,2], index: 2, kind: output, shape index: {}]
  %s3 = sld [smem:[#allocation0]]
  $region22: #{meta_optimizer_mlp.1} parent=0
    _
  %s5 = ssub.s32 1, %s3
  %s6 = scalar_select 0, %s5, %s3
  $region1: #{meta_optimizer_mlp.1} parent=0
    #allocation2 [shape = 'u8[28672]{0}', space=vmem, size = 0x7000, scoped, tag = 'input window, operand 1, single buffered']
    #allocation3 [shape = 's32[1]{0}', space=sflag, size = 0x4, scoped, tag = 'scoped memory for meta_optimizer_mlp.1']
    %7 = vsyncpa [#allocation3], 0
    // Predicated region
    $region2: #{meta_optimizer_mlp.1} parent=1 // pred_check
      _
    $region3: #{meta_optimizer_mlp.1} parent=1 // pred_check_branch
      %9 = sbr.rel (0) target = $region5
    $region4: #{meta_optimizer_mlp.1} parent=1 // pred_region
      _
    $region5: #{meta_optimizer_mlp.1} parent=1 // pred_fallthru
      _
    // Predicated region
    $region6: #{meta_optimizer_mlp.1} parent=1 // pred_check
      _
    $region7: #{meta_optimizer_mlp.1} parent=1 // pred_check_branch
      %11 = sbr.rel (0) target = $region9
    $region8: #{meta_optimizer_mlp.1} parent=1 // pred_region
      %13 = vsyncadd [#allocation3], 0
      %s14 = sshll.u32 %s1, 4
      %s15 = int_to_ptr.hbm [resolvable:$true] %s14
      %s16 = sshll.u32 [#allocation2], 4
      %s17 = int_to_ptr.vmem [resolvable:$true] %s16
      %22 = dma.hbm_to_vmem [thread:$0]  %s15, 896, %s17, [#allocation3], 128, 128, 8
    $region9: #{meta_optimizer_mlp.1} parent=1 // pred_fallthru
      _
    // Predicated region
    $region10: #{meta_optimizer_mlp.1} parent=1 // pred_check
      _
    $region11: #{meta_optimizer_mlp.1} parent=1 // pred_check_branch
      %24 = sbr.rel (0) target = $region13
    $region12: #{meta_optimizer_mlp.1} parent=1 // pred_region
      %26 = dma.done [#allocation3], 896
    $region13: #{meta_optimizer_mlp.1} parent=1 // pred_fallthru
      _
    %v27 = vld [vmem:[%s0] sm:$0xff]
    %v28 = vld [vmem:[#allocation2] sm:$0x1]
    %v29 = vld [vmem:[#allocation2 + $0x1] sm:$0x1]
    %v30 = vld [vmem:[#allocation2 + $0x2] sm:$0x1]
    %v31 = vld [vmem:[#allocation2 + $0x3] sm:$0x1]
    %v32 = vld [vmem:[#allocation2 + $0x8] sm:$0xff]
    %v33 = vld [vmem:[#allocation2 + $0x10] sm:$0xff]
    %v34 = vld [vmem:[#allocation2 + $0x18] sm:$0xf]
    %v35 = vld [vmem:[#allocation2 + $0x20] sm:$0xff]
    %v36 = vld [vmem:[#allocation2 + $0x28] sm:$0xff]
    %v37 = vld [vmem:[#allocation2 + $0x30] sm:$0xf]
    %39 = vset.pattern.permute.xlu0 0
    %40 = vperm.xlu0 %39, %v27
    %v41 = vpop.permute.xlu0 %40
    %v43 = vperm.slane %v28, 0
    %v44 = vmul.f32 %v41, %v43
    %v45 = vperm.slane %v29, 0
    %v46 = vadd.f32 %v44, %v45
    %v47 = vmax.f32 %v46, 0.0
    %v48 = vperm.slane %v30, 0
    %vm49 = vcmask 162816
    %v51 = vsel %vm49, %v47, 0
    %vm53 = vcmask 1043456
    %v55 = vsel %vm53, %v34, 0
    %57 = vmatpush.msra.mxu0 0.0
    %58 = vmatpush.msra.mxu0 0.0
    %59 = vmatpush.msra.mxu0 0.0
    %60 = vmatpush.msra.mxu0 0.0
    %61 = vmatpush.msra.mxu0 0.0
    %62 = vmatpush.msra.mxu0 0.0
    %63 = vmatpush.msra.mxu0 0.0
    %64 = vmatpush.msra.mxu0 0.0
    %65 = vmatpush.msra.mxu0 0.0
    %66 = vmatpush.msra.mxu0 0.0
    %67 = vmatpush.msra.mxu0 0.0
    %68 = vmatpush.msra.mxu0 0.0
    %69 = vmatpush.msra.mxu0 0.0
    %70 = vmatpush.msra.mxu0 %v55
    %71 = vmatpush.msra.mxu0 %v33
    %72 = vmatpush.msra.mxu0 %v32
    %73 = vmatmul.f32.gmra.mxu0 %v51
    %v74 = vpop.f32.mrf.mxu0
    %v75 = vadd.f32 %v48, %v74
    %76 = vdwg.mxu0
    %v77 = vmax.f32 %v75, 0.0
    %v78 = vperm.slane %v31, 0
    %v80 = vsel %vm49, %v77, 0
    %v83 = vsel %vm53, %v37, 0
    %85 = vmatpush.msra.mxu0 0.0
    %86 = vmatpush.msra.mxu0 0.0
    %87 = vmatpush.msra.mxu0 0.0
    %88 = vmatpush.msra.mxu0 0.0
    %89 = vmatpush.msra.mxu0 0.0
    %90 = vmatpush.msra.mxu0 0.0
    %91 = vmatpush.msra.mxu0 0.0
    %92 = vmatpush.msra.mxu0 0.0
    %93 = vmatpush.msra.mxu0 0.0
    %94 = vmatpush.msra.mxu0 0.0
    %95 = vmatpush.msra.mxu0 0.0
    %96 = vmatpush.msra.mxu0 0.0
    %97 = vmatpush.msra.mxu0 0.0
    %98 = vmatpush.msra.mxu0 %v83
    %99 = vmatpush.msra.mxu0 %v36
    %100 = vmatpush.msra.mxu0 %v35
    %101 = vmatmul.f32.gmra.mxu0 %v80
    %v102 = vpop.f32.mrf.mxu0
    %v103 = vadd.f32 %v78, %v102
    %104 = vdwg.mxu0
    %v105 = vsub.f32 0.0, %v103
    %v106 = vmul.f32 %v105, 1.442695
    %v107 = vpow.pop %v106
    %v108 = vadd.f32 %v107, 1.0
    %v109 = vrcp.pop %v108
    %v110 = vmul.f32 %v108, %v109
    %v111 = vsub.f32 1.0, %v110
    %v112 = vmul.f32 %v109, %v111
    %v113 = vadd.f32 %v109, %v112
    %vm114 = vweird.f32 %v108
    %vm115 = vweird.f32 %v109
    %vm116 = vmor %vm114, %vm115
    %v117 = vsel %vm116, %v109, %v113
    %v118 = vand.u32 2147483647, %v108
    %vm119 = vcmp.eq.f32.partialorder %v118, 8.507059e+37
    %v120 = vand.u32 %v108, 2147483648
    %v121 = vor.u32 1.1754944e-38, %v120
    %v122 = vsel %vm119, %v121, %v117
    %vm123 = vcmask 15360
    %v124 = vsel %vm123, %v122, 0.0
    %125 = vadd.xlane.f32.xlu0 %v124
    %v126 = vpop.xlane.xlu0 %125
    %v127 = vrcp.pop %v126
    %v128 = vmul.f32 %v126, %v127
    %v129 = vsub.f32 1.0, %v128
    %v130 = vmul.f32 %v127, %v129
    %v131 = vadd.f32 %v127, %v130
    %vm132 = vweird.f32 %v126
    %vm133 = vweird.f32 %v127
    %vm134 = vmor %vm132, %vm133
    %v135 = vsel %vm134, %v127, %v131
    %v136 = vand.u32 2147483647, %v126
    %vm137 = vcmp.eq.f32.partialorder %v136, 8.507059e+37
    %v138 = vand.u32 %v126, 2147483648
    %v139 = vor.u32 1.1754944e-38, %v138
    %v140 = vsel %vm137, %v139, %v135
    %v141 = vmul.f32 %v122, %v140
    %142 = vst.msk [vmem:[%s2] sm:$0xff] %vm123, %v141
    // Predicated region
    $region14: #{meta_optimizer_mlp.1} parent=1 // pred_check
      _
    $region15: #{meta_optimizer_mlp.1} parent=1 // pred_check_branch
      %144 = sbr.rel (0) target = $region17
    $region16: #{meta_optimizer_mlp.1} parent=1 // pred_region
      _
    $region17: #{meta_optimizer_mlp.1} parent=1 // pred_fallthru
      _
    // Predicated region
    $region18: #{meta_optimizer_mlp.1} parent=1 // pred_check
      _
    $region19: #{meta_optimizer_mlp.1} parent=1 // pred_check_branch
      %146 = sbr.rel (0) target = $region21
    $region20: #{meta_optimizer_mlp.1} parent=1 // pred_region
      _
    $region21: #{meta_optimizer_mlp.1} parent=1 // pred_fallthru
      _
    %147 = vsyncpa [#allocation3], 1

</llo_original>
